<compile_context>
chip_gen: v6e
topology: v6e:2x2x1
jax: 0.10.0
libtpu: 0.0.40
codegen_flags: <defaults>
</compile_context>

<pallas_src>
import functools
import math

import jax
import jax.numpy as jnp
from jax.experimental import pallas as pl
from jax.experimental.pallas import tpu as pltpu


_NEG_INF = -1e30


def _default_vmem_limit():
    """v4/v5/v6 have 128 MiB VMEM per core; v7x has 64 MiB per TensorCore."""
    try:
        kind = jax.devices()[0].device_kind.lower()
    except Exception:  # pragma: no cover
        kind = ""
    if any(t in kind for t in ("v4", "v5", "v6")):
        return 100 * 1024 * 1024
    return 48 * 1024 * 1024


_VMEM_LIMIT = _default_vmem_limit()


def _round_up(x, m):
    return (x + m - 1) // m * m


def _pick_tile(dim, target, multiple=8):
    """Largest power-of-two tile <= target dividing dim that respects the
    (8, 128) layout minimum; falls back to the full dim."""
    if dim <= target:
        return dim
    t = target
    while t >= multiple and dim % t:
        t //= 2
    return t if (t >= multiple and dim % t == 0) else dim


# ----------------------------- Pallas kernels ------------------------------

def _matmul_kernel(x_ref, w_ref, b_ref, o_ref, acc_ref, *, relu):
    """Tiled X @ W + b (optional ReLU).  Grid (M//tm, N//tn, K//tk)."""
    @pl.when(pl.program_id(2) == 0)
    def _():
        acc_ref[...] = jnp.zeros_like(acc_ref)

    acc_ref[...] += jnp.dot(x_ref[...], w_ref[...],
                            preferred_element_type=jnp.float32)

    @pl.when(pl.program_id(2) == pl.num_programs(2) - 1)
    def _():
        y = acc_ref[...] + b_ref[...].astype(jnp.float32)
        if relu:
            y = jnp.maximum(y, 0.0)
        o_ref[...] = y.astype(o_ref.dtype)


def _matmul_residual_ln_kernel(x_ref, w_ref, b_ref, r_ref, g_ref, be_ref,
                               o_ref, acc_ref, *, eps):
    """LayerNorm((X @ W + b) + residual) fused into the matmul epilogue.
    Grid (M//tm, K//tk); the full output feature dim lives in one tile."""
    @pl.when(pl.program_id(1) == 0)
    def _():
        acc_ref[...] = jnp.zeros_like(acc_ref)

    acc_ref[...] += jnp.dot(x_ref[...], w_ref[...],
                            preferred_element_type=jnp.float32)

    @pl.when(pl.program_id(1) == pl.num_programs(1) - 1)
    def _():
        y = (acc_ref[...] + b_ref[...].astype(jnp.float32)
             + r_ref[...].astype(jnp.float32))
        mu = jnp.mean(y, axis=-1, keepdims=True)
        var = jnp.mean(jnp.square(y - mu), axis=-1, keepdims=True)
        yn = (y - mu) * jax.lax.rsqrt(var + eps)
        o_ref[...] = (yn * g_ref[...].astype(jnp.float32)
                      + be_ref[...].astype(jnp.float32)).astype(o_ref.dtype)


def _flash_attn_kernel(q_ref, k_ref, v_ref, o_ref, m_sc, l_sc, acc_sc, *,
                       causal, num_heads, head_dim, tq, tkv):
    """Flash-attention forward, heads handled by an in-kernel (static) loop.
    q_ref: (tq, D); k_ref/v_ref: (tkv, D); D = num_heads*head_dim.
    Grid (B, Sq//tq, Sk//tkv); kv axis is 'arbitrary'.
    1/sqrt(head_dim) is folded into the Q projection weights at init."""
    qi = pl.program_id(1)
    ki = pl.program_id(2)

    @pl.when(ki == 0)
    def _():
        m_sc[...] = jnp.full_like(m_sc, -jnp.inf)
        l_sc[...] = jnp.zeros_like(l_sc)
        acc_sc[...] = jnp.zeros_like(acc_sc)

    def update(apply_mask):
        if apply_mask:
            row = qi * tq + jax.lax.broadcasted_iota(jnp.int32, (tq, tkv), 0)
            col = ki * tkv + jax.lax.broadcasted_iota(jnp.int32, (tq, tkv), 1)
            keep = col <= row
        for h in range(num_heads):
            sl = slice(h * head_dim, (h + 1) * head_dim)
            # contract head_dim of both operands (no k transpose; stays on MXU).
            s = jax.lax.dot_general(q_ref[:, sl], k_ref[:, sl],
                                    (((1,), (1,)), ((), ())),
                                    preferred_element_type=jnp.float32)
            if apply_mask:
                s = jnp.where(keep, s, _NEG_INF)
            m_prev = m_sc[h]
            m_new = jnp.maximum(m_prev, jnp.max(s, axis=-1, keepdims=True))
            alpha = jnp.exp(m_prev - m_new)
            p = jnp.exp(s - m_new)
            l_sc[h] = alpha * l_sc[h] + jnp.sum(p, axis=-1, keepdims=True)
            acc_sc[h] = alpha * acc_sc[h] + jnp.dot(
                p.astype(v_ref.dtype), v_ref[:, sl],
                preferred_element_type=jnp.float32)
            m_sc[h] = m_new

    if causal:
        q_first = qi * tq
        q_last = q_first + tq - 1
        kv_first = ki * tkv
        kv_last = kv_first + tkv - 1
        # diagonal-straddling kv blocks: masked update.
        pl.when(jnp.logical_and(kv_first <= q_last, kv_last > q_first))(
            lambda: update(True))
        # fully-visible kv blocks: no iota / where in the steady state.
        pl.when(kv_last <= q_first)(lambda: update(False))
        # fully-masked blocks: compute skipped; k/v index maps are clamped so
        # no K/V DMA is issued for them either.
    else:
        update(False)

    @pl.when(ki == pl.num_programs(2) - 1)
    def _():
        for h in range(num_heads):
            sl = slice(h * head_dim, (h + 1) * head_dim)
            o_ref[:, sl] = (acc_sc[h] *
                            pl.reciprocal(l_sc[h], approx=True)
                            ).astype(o_ref.dtype)


def _matmul_softmax_stats_kernel(x_ref, w_ref, b_ref,
                                 o_ref, m_ref, l_ref,
                                 acc_ref, m_sc, l_sc):
    """Vocab projection: tiled logits matmul + online per-row max / sum-exp over
    vocab tiles.  Grid (M//tm, V//tn, K//tk), j & k 'arbitrary'.
    Logits are stored in bf16; stats are computed from the *stored* values so
    the second (normalization) pass yields rows that sum to exactly 1."""
    j = pl.program_id(1)
    k = pl.program_id(2)
    nj = pl.num_programs(1)
    nk = pl.num_programs(2)

    @pl.when((j == 0) & (k == 0))
    def _():
        m_sc[...] = jnp.full_like(m_sc, -jnp.inf)
        l_sc[...] = jnp.zeros_like(l_sc)

    @pl.when(k == 0)
    def _():
        acc_ref[...] = jnp.zeros_like(acc_ref)

    acc_ref[...] += jnp.dot(x_ref[...], w_ref[...],
                            preferred_element_type=jnp.float32)

    @pl.when(k == nk - 1)
    def _():
        y = acc_ref[...] + b_ref[...].astype(jnp.float32)
        y_store = y.astype(o_ref.dtype)
        o_ref[...] = y_store
        yr = y_store.astype(jnp.float32)
        m_prev = m_sc[...]
        m_new = jnp.maximum(m_prev, jnp.max(yr, axis=-1, keepdims=True))
        l_sc[...] = (jnp.exp(m_prev - m_new) * l_sc[...]
                     + jnp.sum(jnp.exp(yr - m_new), axis=-1, keepdims=True))
        m_sc[...] = m_new

    @pl.when((j == nj - 1) & (k == nk - 1))
    def _():
        m_ref[...] = m_sc[...]
        l_ref[...] = l_sc[...]


def _softmax_norm_kernel(y_ref, m_ref, l_ref, o_ref):
    y = y_ref[...].astype(jnp.float32)
    o_ref[...] = (jnp.exp(y - m_ref[...]) / l_ref[...]).astype(o_ref.dtype)


# ------------------------------- wrappers -----------------------------------

def linear(x2d, w, b, *, relu=False, tm=512, tn=512, tk=512):
    M, K = x2d.shape
    N = w.shape[1]
    tm = _pick_tile(M, tm, 8)
    tn = _pick_tile(N, tn, 128)
    tk = _pick_tile(K, tk, 128)
    grid = (M // tm, N // tn, K // tk)
    return pl.pallas_call(
        functools.partial(_matmul_kernel, relu=relu),
        out_shape=jax.ShapeDtypeStruct((M, N), x2d.dtype),
        grid_spec=pltpu.PrefetchScalarGridSpec(
            num_scalar_prefetch=0,
            grid=grid,
            in_specs=[pl.BlockSpec((tm, tk), lambda i, j, k: (i, k)),
                      pl.BlockSpec((tk, tn), lambda i, j, k: (k, j)),
                      pl.BlockSpec((1, tn), lambda i, j, k: (0, j))],
            out_specs=pl.BlockSpec((tm, tn), lambda i, j, k: (i, j)),
            scratch_shapes=[pltpu.VMEM((tm, tn), jnp.float32)]),
        compiler_params=pltpu.CompilerParams(
            dimension_semantics=("parallel", "parallel", "arbitrary"),
            vmem_limit_bytes=_VMEM_LIMIT),
        cost_estimate=pl.CostEstimate(
            flops=2 * M * N * K, transcendentals=0,
            bytes_accessed=2 * (M * K + K * N + M * N)),
    )(x2d, w, b)


def linear_residual_layernorm(x2d, w, b, resid2d, gamma, beta,
                              *, eps=1e-5, tm=512, tk=512):
    """LayerNorm((x2d @ w + b) + resid2d) with the LN fused in the matmul epilogue."""
    M, K = x2d.shape
    D = w.shape[1]
    tm = _pick_tile(M, tm, 8)
    tk = _pick_tile(K, tk, 128)
    # keep >= 2 parallel row blocks when possible so both v7x TensorCores get work.
    if M // tm < 2:
        half = tm // 2
        if half >= 8 and half % 8 == 0 and M % half == 0:
            tm = half
    grid = (M // tm, K // tk)
    return pl.pallas_call(
        functools.partial(_matmul_residual_ln_kernel, eps=eps),
        out_shape=jax.ShapeDtypeStruct((M, D), x2d.dtype),
        grid_spec=pltpu.PrefetchScalarGridSpec(
            num_scalar_prefetch=0,
            grid=grid,
            in_specs=[pl.BlockSpec((tm, tk), lambda i, k: (i, k)),
                      pl.BlockSpec((tk, D), lambda i, k: (k, 0)),
                      pl.BlockSpec((1, D), lambda i, k: (0, 0)),
                      pl.BlockSpec((tm, D), lambda i, k: (i, 0)),
                      pl.BlockSpec((1, D), lambda i, k: (0, 0)),
                      pl.BlockSpec((1, D), lambda i, k: (0, 0))],
            out_specs=pl.BlockSpec((tm, D), lambda i, k: (i, 0)),
            scratch_shapes=[pltpu.VMEM((tm, D), jnp.float32)]),
        compiler_params=pltpu.CompilerParams(
            dimension_semantics=("parallel", "arbitrary"),
            vmem_limit_bytes=_VMEM_LIMIT),
        cost_estimate=pl.CostEstimate(
            flops=2 * M * K * D + 10 * M * D, transcendentals=M,
            bytes_accessed=2 * (M * K + K * D + 2 * M * D)),
    )(x2d, w, b, resid2d, gamma, beta)


def attention(q_arr, kv_arr, *, num_heads, head_dim, q_col, k_col, v_col,
              causal, tq=256, tkv=256):
    """Flash attention over column blocks of fused projection outputs.

    q_arr: (B, Sq, *) with the query features in column block `q_col`;
    kv_arr: (B, Sk, *) with key / value features in column blocks `k_col`/`v_col`.
    Each column block is D = num_heads * head_dim wide.  Returns (B, Sq, D).
    """
    B, Sq, _ = q_arr.shape
    Sk = kv_arr.shape[1]
    D = num_heads * head_dim
    assert D % 128 == 0, "attention fast path needs num_heads*head_dim % 128 == 0"
    tq = _pick_tile(Sq, tq, 8)
    tkv = _pick_tile(Sk, tkv, 8)
    grid = (B, Sq // tq, Sk // tkv)

    def q_map(b, qi, ki):
        return (b, qi, q_col)

    if causal:
        def kv_map(col):
            def idx(b, qi, ki):
                # clamp so above-diagonal grid steps reuse the resident block
                # instead of issuing a new (wasted) K/V DMA.
                last_needed = (qi * tq + tq - 1) // tkv
                return (b, jnp.minimum(ki, last_needed), col)
            return idx
    else:
        def kv_map(col):
            return lambda b, qi, ki, _c=col: (b, ki, _c)

    kernel = functools.partial(_flash_attn_kernel, causal=causal,
                               num_heads=num_heads, head_dim=head_dim,
                               tq=tq, tkv=tkv)
    return pl.pallas_call(
        kernel,
        out_shape=jax.ShapeDtypeStruct((B, Sq, D), q_arr.dtype),
        grid_spec=pltpu.PrefetchScalarGridSpec(
            num_scalar_prefetch=0,
            grid=grid,
            in_specs=[pl.BlockSpec((None, tq, D), q_map),
                      pl.BlockSpec((None, tkv, D), kv_map(k_col)),
                      pl.BlockSpec((None, tkv, D), kv_map(v_col))],
            out_specs=pl.BlockSpec((None, tq, D), lambda b, qi, ki: (b, qi, 0)),
            scratch_shapes=[pltpu.VMEM((num_heads, tq, 1), jnp.float32),
                            pltpu.VMEM((num_heads, tq, 1), jnp.float32),
                            pltpu.VMEM((num_heads, tq, head_dim), jnp.float32)]),
        compiler_params=pltpu.CompilerParams(
            dimension_semantics=("parallel", "parallel", "arbitrary"),
            vmem_limit_bytes=_VMEM_LIMIT),
        cost_estimate=pl.CostEstimate(
            flops=4 * B * Sq * Sk * D,
            transcendentals=B * num_heads * Sq * Sk,
            bytes_accessed=2 * B * (2 * Sq * D + 2 * Sk * D)),
    )(q_arr, kv_arr, kv_arr)


def linear_softmax(x2d, w, b, *, tm=512, tn=512, tk=512, out_dtype=jnp.float32):
    """softmax(x2d @ w + b) over the (already lane-padded) vocab dimension."""
    M, K = x2d.shape
    V = w.shape[1]
    tm = _pick_tile(M, tm, 8)
    tn = _pick_tile(V, tn, 128)
    tk = _pick_tile(K, tk, 128)
    if M // tm < 2:
        half = tm // 2
        if half >= 8 and half % 8 == 0 and M % half == 0:
            tm = half
    grid = (M // tm, V // tn, K // tk)

    logits, m, l = pl.pallas_call(
        _matmul_softmax_stats_kernel,
        out_shape=(jax.ShapeDtypeStruct((M, V), jnp.bfloat16),
                   jax.ShapeDtypeStruct((M, 1), jnp.float32),
                   jax.ShapeDtypeStruct((M, 1), jnp.float32)),
        grid_spec=pltpu.PrefetchScalarGridSpec(
            num_scalar_prefetch=0,
            grid=grid,
            in_specs=[pl.BlockSpec((tm, tk), lambda i, j, k: (i, k)),
                      pl.BlockSpec((tk, tn), lambda i, j, k: (k, j)),
                      pl.BlockSpec((1, tn), lambda i, j, k: (0, j))],
            out_specs=(pl.BlockSpec((tm, tn), lambda i, j, k: (i, j)),
                       pl.BlockSpec((tm, 1), lambda i, j, k: (i, 0)),
                       pl.BlockSpec((tm, 1), lambda i, j, k: (i, 0))),
            scratch_shapes=[pltpu.VMEM((tm, tn), jnp.float32),
                            pltpu.VMEM((tm, 1), jnp.float32),
                            pltpu.VMEM((tm, 1), jnp.float32)]),
        compiler_params=pltpu.CompilerParams(
            dimension_semantics=("parallel", "arbitrary", "arbitrary"),
            vmem_limit_bytes=_VMEM_LIMIT),
        cost_estimate=pl.CostEstimate(
            flops=2 * M * K * V + 4 * M * V, transcendentals=M * V,
            bytes_accessed=2 * (M * K + K * V + M * V)),
    )(x2d, w, b)

    probs = pl.pallas_call(
        _softmax_norm_kernel,
        out_shape=jax.ShapeDtypeStruct((M, V), out_dtype),
        grid_spec=pltpu.PrefetchScalarGridSpec(
            num_scalar_prefetch=0,
            grid=(M // tm, V // tn),
            in_specs=[pl.BlockSpec((tm, tn), lambda i, j: (i, j)),
                      pl.BlockSpec((tm, 1), lambda i, j: (i, 0)),
                      pl.BlockSpec((tm, 1), lambda i, j: (i, 0))],
            out_specs=pl.BlockSpec((tm, tn), lambda i, j: (i, j))),
        compiler_params=pltpu.CompilerParams(
            dimension_semantics=("parallel", "parallel"),
            vmem_limit_bytes=_VMEM_LIMIT),
        cost_estimate=pl.CostEstimate(
            flops=2 * M * V, transcendentals=M * V,
            bytes_accessed=2 * M * V + 4 * M * V),
    )(logits, m, l)
    return probs


# ---------------------------- transformer pieces -----------------------------

def _self_attention(x3d, p, *, num_heads, causal):
    """Fused QKV projection + flash attention.  Returns (B*S, D) pre-wo output."""
    B, S, D = x3d.shape
    dh = D // num_heads
    qkv = linear(x3d.reshape(B * S, D), p["w_qkv"], p["b_qkv"])        # (B*S, 3D)
    qkv = qkv.reshape(B, S, 3 * D)                                     # free view
    o = attention(qkv, qkv, num_heads=num_heads, head_dim=dh,
                  q_col=0, k_col=1, v_col=2, causal=causal)
    return o.reshape(B * S, D)


def _cross_attention(xq3d, xkv3d, p, *, num_heads):
    """Q projection on xq, fused K/V projection on xkv, flash attention."""
    B, Sq, D = xq3d.shape
    Sk = xkv3d.shape[1]
    dh = D // num_heads
    q = linear(xq3d.reshape(B * Sq, D), p["w_q"], p["b_q"]).reshape(B, Sq, D)
    kv = linear(xkv3d.reshape(B * Sk, D), p["w_kv"], p["b_kv"]).reshape(B, Sk, 2 * D)
    o = attention(q, kv, num_heads=num_heads, head_dim=dh,
                  q_col=0, k_col=0, v_col=1, causal=False)
    return o.reshape(B * Sq, D)


def encoder_block(x, p, *, num_heads):
    B, S, D = x.shape
    x2d = x.reshape(B * S, D)
    a = _self_attention(x, p["attn"], num_heads=num_heads, causal=False)
    # wo projection fused with residual add + LayerNorm
    x2d = linear_residual_layernorm(a, p["attn"]["wo"], p["attn"]["bo"],
                                    x2d, p["ln1_g"], p["ln1_b"])
    h = linear(x2d, p["ffn"]["w1"], p["ffn"]["b1"], relu=True)
    x2d = linear_residual_layernorm(h, p["ffn"]["w2"], p["ffn"]["b2"],
                                    x2d, p["ln2_g"], p["ln2_b"])
    return x2d.reshape(B, S, D)


def decoder_block(x, enc_out, p, *, num_heads):
    B, S, D = x.shape
    x2d = x.reshape(B * S, D)
    a = _self_attention(x, p["self_attn"], num_heads=num_heads, causal=True)
    x2d = linear_residual_layernorm(a, p["self_attn"]["wo"], p["self_attn"]["bo"],
                                    x2d, p["ln1_g"], p["ln1_b"])
    c = _cross_attention(x2d.reshape(B, S, D), enc_out, p["cross_attn"],
                         num_heads=num_heads)
    x2d = linear_residual_layernorm(c, p["cross_attn"]["wo"], p["cross_attn"]["bo"],
                                    x2d, p["ln2_g"], p["ln2_b"])
    h = linear(x2d, p["ffn"]["w1"], p["ffn"]["b1"], relu=True)
    x2d = linear_residual_layernorm(h, p["ffn"]["w2"], p["ffn"]["b2"],
                                    x2d, p["ln3_g"], p["ln3_b"])
    return x2d.reshape(B, S, D)


def transformer_block(x, params, *, num_heads):
    # forward():  Y = X; Y = enc_i(Y)...;  X = dec_i(X, Y)...;  X = softmax(fc1(X))
    x = x.astype(jnp.bfloat16)
    y = x
    for p in params["encoders"]:
        y = encoder_block(y, p, num_heads=num_heads)
    for p in params["decoders"]:
        x = decoder_block(x, y, p, num_heads=num_heads)
    B, S, D = x.shape
    vocab = params["vocab_size"]
    probs = linear_softmax(x.reshape(B * S, D), params["fc1_w"], params["fc1_b"])
    return probs[:, :vocab].reshape(B, S, vocab)   # drop padded vocab columns


# ---------------------------- deterministic init ----------------------------

def _init_linear(key, din, dout):
    w = (jax.random.normal(key, (din, dout), jnp.float32)
         * (1.0 / math.sqrt(din))).astype(jnp.bfloat16)
    b = jnp.zeros((1, dout), jnp.float32)
    return w, b


def _init_attn_params(key, d, num_heads, *, cross):
    dh = d // num_heads
    scale = 1.0 / math.sqrt(dh)        # folded into the Q projection (no runtime cost)
    kq, kk, kv, ko = jax.random.split(key, 4)
    wq, bq = _init_linear(kq, d, d)
    wq = (wq.astype(jnp.float32) * scale).astype(jnp.bfloat16)
    bq = bq * scale
    wk, _ = _init_linear(kk, d, d)
    wv, _ = _init_linear(kv, d, d)
    wo, bo = _init_linear(ko, d, d)
    if cross:
        return {"w_q": wq, "b_q": bq,
                "w_kv": jnp.concatenate([wk, wv], axis=1),
                "b_kv": jnp.zeros((1, 2 * d), jnp.float32),
                "wo": wo, "bo": bo}
    return {"w_qkv": jnp.concatenate([wq, wk, wv], axis=1),
            "b_qkv": jnp.concatenate([bq, jnp.zeros((1, 2 * d), jnp.float32)], axis=1),
            "wo": wo, "bo": bo}


def _init_ffn_params(key, d, hidden):
    k1, k2 = jax.random.split(key)
    w1, b1 = _init_linear(k1, d, hidden)
    w2, b2 = _init_linear(k2, hidden, d)
    return {"w1": w1, "b1": b1, "w2": w2, "b2": b2}


def _ln_params(d):
    return jnp.ones((1, d), jnp.float32), jnp.zeros((1, d), jnp.float32)


def init_params(key, *, d, n_enc, n_dec, vocab, ffn_hidden, num_heads):
    keys = jax.random.split(key, n_enc + n_dec + 1)
    encoders = []
    for i in range(n_enc):
        k1, k2 = jax.random.split(keys[i])
        g1, b1 = _ln_params(d)
        g2, b2 = _ln_params(d)
        encoders.append({"attn": _init_attn_params(k1, d, num_heads, cross=False),
                         "ffn": _init_ffn_params(k2, d, ffn_hidden),
                         "ln1_g": g1, "ln1_b": b1, "ln2_g": g2, "ln2_b": b2})
    decoders = []
    for i in range(n_dec):
        k1, k2, k3 = jax.random.split(keys[n_enc + i], 3)
        g1, b1 = _ln_params(d)
        g2, b2 = _ln_params(d)
        g3, b3 = _ln_params(d)
        decoders.append({"self_attn": _init_attn_params(k1, d, num_heads, cross=False),
                         "cross_attn": _init_attn_params(k2, d, num_heads, cross=True),
                         "ffn": _init_ffn_params(k3, d, ffn_hidden),
                         "ln1_g": g1, "ln1_b": b1,
                         "ln2_g": g2, "ln2_b": b2,
                         "ln3_g": g3, "ln3_b": b3})
    fc1_w, fc1_b = _init_linear(keys[-1], d, vocab)
    # pad the vocab dim to a lane-dense multiple of 512 (50000 -> 50176);
    # padded bias = -1e30 so padded columns get ~0 probability.
    vpad = _round_up(vocab, 512)
    if vpad != vocab:
        fc1_w = jnp.pad(fc1_w, ((0, 0), (0, vpad - vocab)))
        fc1_b = jnp.pad(fc1_b, ((0, 0), (0, vpad - vocab)),
                        constant_values=_NEG_INF)
    return {"encoders": encoders, "decoders": decoders,
            "fc1_w": fc1_w, "fc1_b": fc1_b, "vocab_size": vocab}


# ----------------------------------- main ------------------------------------

if __name__ == "__main__":
    B, S, D, H = 2, 8, 256, 2      # small shapes; module defaults are D=512, H=2
    N_ENC, N_DEC = 2, 2            # module default is 5/5; reduced for the demo
    VOCAB = 1000                   # module default is 50000; exercises vocab padding

    key = jax.random.PRNGKey(0)
    kx, kp = jax.random.split(key)
    x = jax.random.normal(kx, (B, S, D), jnp.float32)
    params = init_params(kp, d=D, n_enc=N_ENC, n_dec=N_DEC,
                         vocab=VOCAB, ffn_hidden=4 * D, num_heads=H)

    out = transformer_block(x, params, num_heads=H)
    out = jax.block_until_ready(out)
    assert out.shape == (B, S, VOCAB)
    assert bool(jnp.all(jnp.isfinite(out)))
    assert bool(jnp.allclose(out.sum(-1), 1.0, atol=1e-3))   # rows are softmax-normalized
    print("KERNEL_OK")
</pallas_src>

<mosaic_0001>
module attributes {stable_mosaic.version = 11 : i64} {
  func.func @_matmul_kernel(%arg0: i32, %arg1: i32, %arg2: i32, %arg3: memref<16x256xbf16, #tpu.memory_space<vmem>>, %arg4: memref<256x256xbf16, #tpu.memory_space<vmem>>, %arg5: memref<1x256xf32, #tpu.memory_space<vmem>>, %arg6: memref<16x256xbf16, #tpu.memory_space<vmem>>, %arg7: memref<16x256xf32, #tpu.memory_space<vmem>>) attributes {dimension_semantics = [#tpu.dimension_semantics<parallel>, #tpu.dimension_semantics<parallel>, #tpu.dimension_semantics<arbitrary>], iteration_bounds = array<i64: 1, 3, 1>, scalar_prefetch = 0 : i64, scratch_operands = 1 : i64, tpu.core_type = #tpu.core_type<tc>, window_params = [{transform_indices = @transform_0, window_bounds = array<i64: 16, 256>}, {transform_indices = @transform_1, window_bounds = array<i64: 256, 256>}, {transform_indices = @transform_2, window_bounds = array<i64: 1, 256>}, {transform_indices = @transform_3, window_bounds = array<i64: 16, 256>}]} {
    %c0_i32 = arith.constant 0 : i32
    %0 = arith.cmpi eq, %arg2, %c0_i32 : i32
    %1 = arith.extui %0 : i1 to i32
    %c0_i32_0 = arith.constant 0 : i32
    %2 = arith.cmpi ne, %1, %c0_i32_0 : i32
    scf.if %2 {
      %cst_10 = arith.constant 0.000000e+00 : f32
      %12 = vector.broadcast %cst_10 : f32 to vector<16x256xf32>
      %c0_11 = arith.constant 0 : index
      %c0_12 = arith.constant 0 : index
      %13 = vector.load %arg7[%c0_11, %c0_12] : memref<16x256xf32, #tpu.memory_space<vmem>>, vector<16x256xf32>
      tpu.vector_store %arg7[%c0_11, %c0_12], %12 {strides = array<i32>} : memref<16x256xf32, #tpu.memory_space<vmem>>, vector<16x256xf32>,
    } else {
    }
    %c0 = arith.constant 0 : index
    %c0_1 = arith.constant 0 : index
    %3 = vector.load %arg7[%c0, %c0_1] : memref<16x256xf32, #tpu.memory_space<vmem>>, vector<16x256xf32>
    %c0_2 = arith.constant 0 : index
    %c0_3 = arith.constant 0 : index
    %4 = vector.load %arg3[%c0_2, %c0_3] : memref<16x256xbf16, #tpu.memory_space<vmem>>, vector<16x256xbf16>
    %c0_4 = arith.constant 0 : index
    %c0_5 = arith.constant 0 : index
    %5 = vector.load %arg4[%c0_4, %c0_5] : memref<256x256xbf16, #tpu.memory_space<vmem>>, vector<256x256xbf16>
    %cst = arith.constant dense<0.000000e+00> : vector<16x256xf32>
    %6 = tpu.matmul %4, %5, %cst {dimension_numbers = #tpu.dot_dimension_numbers<[1], [0], [0], [1], [0, 0, 1, 1], [], []>} : vector<16x256xbf16>, vector<256x256xbf16>, vector<16x256xf32> -> vector<16x256xf32>
    %7 = arith.addf %3, %6 : vector<16x256xf32>
    %c0_6 = arith.constant 0 : index
    %c0_7 = arith.constant 0 : index
    %8 = vector.load %arg7[%c0_6, %c0_7] : memref<16x256xf32, #tpu.memory_space<vmem>>, vector<16x256xf32>
    tpu.vector_store %arg7[%c0_6, %c0_7], %7 {strides = array<i32>} : memref<16x256xf32, #tpu.memory_space<vmem>>, vector<16x256xf32>,
    %c0_i32_8 = arith.constant 0 : i32
    %9 = arith.cmpi eq, %arg2, %c0_i32_8 : i32
    %10 = arith.extui %9 : i1 to i32
    %c0_i32_9 = arith.constant 0 : i32
    %11 = arith.cmpi ne, %10, %c0_i32_9 : i32
    scf.if %11 {
      %c0_10 = arith.constant 0 : index
      %c0_11 = arith.constant 0 : index
      %12 = vector.load %arg7[%c0_10, %c0_11] : memref<16x256xf32, #tpu.memory_space<vmem>>, vector<16x256xf32>
      %c0_12 = arith.constant 0 : index
      %c0_13 = arith.constant 0 : index
      %13 = vector.load %arg5[%c0_12, %c0_13] : memref<1x256xf32, #tpu.memory_space<vmem>>, vector<1x256xf32>
      %14 = vector.broadcast %13 : vector<1x256xf32> to vector<16x256xf32>
      %15 = arith.addf %12, %14 : vector<16x256xf32>
      %16 = arith.truncf %15 : vector<16x256xf32> to vector<16x256xbf16>
      %c0_14 = arith.constant 0 : index
      %c0_15 = arith.constant 0 : index
      %17 = vector.load %arg6[%c0_14, %c0_15] : memref<16x256xbf16, #tpu.memory_space<vmem>>, vector<16x256xbf16>
      tpu.vector_store %arg6[%c0_14, %c0_15], %16 {strides = array<i32>} : memref<16x256xbf16, #tpu.memory_space<vmem>>, vector<16x256xbf16>,
    } else {
    }
    return
  }
  func.func @transform_0(%arg0: i32, %arg1: i32, %arg2: i32) -> (i32, i32) {
    %c0_i32 = arith.constant 0 : i32
    return %arg0, %arg2 : i32, i32
  }
  func.func @transform_1(%arg0: i32, %arg1: i32, %arg2: i32) -> (i32, i32) {
    %c0_i32 = arith.constant 0 : i32
    return %arg2, %arg1 : i32, i32
  }
  func.func @transform_2(%arg0: i32, %arg1: i32, %arg2: i32) -> (i32, i32) {
    %c0_i32 = arith.constant 0 : i32
    %c0_i32_0 = arith.constant 0 : i32
    return %c0_i32, %arg1 : i32, i32
  }
  func.func @transform_3(%arg0: i32, %arg1: i32, %arg2: i32) -> (i32, i32) {
    %c0_i32 = arith.constant 0 : i32
    return %arg0, %arg1 : i32, i32
  }
}

</mosaic_0001>

<llo_original>
// kernel: tpu_custom_call.1
$region0: #{tpu_custom_call.1}
  #allocation0 [shape = 'u32[]', space=smem, size = 0x4, offset = 0x4, fixed_abs, tag = 'smem constant byte address 0x4 - core index']
  #allocation1 [shape = 'u32[144,128]{1,0:T(1,128)}', space=vmem, size = 0x12000, scoped, tag = 'internal scratch']
  #allocation2 [shape = 'f32[16,256]{1,0:T(8,128)}', space=vmem, size = 0x4000, scoped, tag = 'scratch operand']
  %s0 = inlined_call_operand.hbm [shape: bf16[16,256], index: 0, kind: input, shape index: {}]
  %s1 = inlined_call_operand.hbm [shape: bf16[256,768], index: 1, kind: input, shape index: {}]
  %s2 = inlined_call_operand.hbm [shape: f32[1,768], index: 2, kind: input, shape index: {}]
  %s3 = inlined_call_operand.hbm [shape: bf16[16,768], index: 3, kind: output, shape index: {}]
  %s4 = sld [smem:[#allocation0]]
  $region65: #{tpu_custom_call.1} parent=0
    _
  %s6 = ssub.s32 1, %s4
  %s7 = scalar_select 0, %s6, %s4
  $region1: #{tpu_custom_call.1} parent=0
    #allocation3 [shape = 'u8[8192]{0}', space=vmem, size = 0x2000, scoped, tag = 'input window, operand 0, single buffered']
    #allocation4 [shape = 's32[2]{0}', space=sflag, size = 0x8, scoped, tag = 'scoped memory for tpu_custom_call.1']
    #allocation5 [shape = 's32[2]{0}', space=sflag, size = 0x8, scoped, tag = 'scoped memory for tpu_custom_call.1']
    #allocation6 [shape = 'u8[262144]{0}', space=vmem, size = 0x40000, scoped, tag = 'input window, operand 1']
    #allocation7 [shape = 's32[2]{0}', space=sflag, size = 0x8, scoped, tag = 'scoped memory for tpu_custom_call.1']
    #allocation8 [shape = 'u8[2048]{0}', space=vmem, size = 0x800, scoped, tag = 'input window, operand 2']
    #allocation9 [shape = 'u8[16384]{0}', space=vmem, size = 0x4000, scoped, tag = 'output window, operand 0']
    %8 = vsyncpa [#allocation4], 0
    %9 = vsyncpa [#allocation7], 0
    %s10 = scalar_lea.sflag [#allocation7], 1
    %11 = vsyncpa %s10, 0
    %12 = vsyncpa [#allocation5], 0
    %s13 = scalar_lea.sflag [#allocation5], 1
    %14 = vsyncpa %s13, 0
    loop: start=0, step=1, limit=5
    $region2: #{tpu_custom_call.1} parent=1 // loop_pre_header
      _
    $region3: #{tpu_custom_call.1} parent=1 // loop_header
      %s16 = sphi 0, %s20
      %p17 = scmp.ge.s32.totalorder %s16, 5
      %s23 = sphi 0, %s42
      %s24 = sphi 0, %s38
      %s25 = sphi 0, %s34
      %s26 = sphi 0, %s23
      %s27 = sphi 0, %s24
      %s28 = sphi 0, %s25
      %s29 = sphi 0, %s26
      %s30 = sphi 0, %s27
      %s31 = sphi 0, %s28
      %s47 = sphi 0, %s49
      %s50 = sphi 0, %s47
      %s51 = sphi 0, %s50
      %s67 = sphi 0, %s51
      %s75 = sphi 0, %s77
      %s78 = sphi 0, %s75
      %s79 = sphi 0, %s78
      %s95 = sphi 0, %s79
      %s101 = sphi 0, %s103
      %s104 = sphi 0, %s101
      %s105 = sphi 0, %s104
      %s121 = sphi 0, %s105
      %s129 = sphi 0, %s131
      %s132 = sphi 0, %s129
      %s133 = sphi 0, %s132
      %s149 = sphi 0, %s133
    $region4: #{tpu_custom_call.1} parent=1 // loop_header_branch
      %19 = sbr.rel (%p17) target = $region8
    $region5: #{tpu_custom_call.1} parent=1 // loop_body
      %s21 = ssub.s32 %s16, 1
      %s22 = ssub.s32 %s16, 2
      %s32 = sadd.s32 1, %s25
      %p33 = scmp.ge.s32.totalorder %s32, 1
      %s34 = scalar_select %p33, 0, %s32
      %s35 = sadd.s32 1, %s24
      %s36 = scalar_select %p33, %s35, %s24
      %p37 = scmp.ge.s32.totalorder %s36, 3
      %s38 = scalar_select %p37, 0, %s36
      %s39 = sadd.s32 1, %s23
      %s40 = scalar_select %p37, %s39, %s23
      %p41 = scmp.ge.s32.totalorder %s40, 1
      %s42 = scalar_select %p41, 0, %s40
      %s43 = ssub.s32 %s23, %s42
      %s44 = ssub.s32 %s25, %s34
      %s45 = sor.u32 %s43, %s44
      %p46 = scmp.eq.s32.totalorder %s45, 0
      %s48 = sadd.s32 %s47, 1
      %s49 = scalar_select %p46, %s47, %s48
      %p52 = pneg %p46
      %p53 = scmp.eq.s32.totalorder %s16, 2
      %p54 = por %p52, %p53
      %p55 = scmp.ne.s32.totalorder %s47, %s50
      %p56 = scmp.eq.s32.totalorder %s16, 0
      %p57 = por %p55, %p56
      %p58 = scmp.ne.s32.totalorder %s47, %s50
      %p59 = scmp.eq.s32.totalorder %s21, 2
      %p60 = por %p58, %p59
      %p61 = scmp.ne.s32.totalorder %s50, %s51
      %p62 = scmp.eq.s32.totalorder %s21, 0
      %p63 = por %p61, %p62
      %p64 = scmp.ne.s32.totalorder %s50, %s51
      %p65 = scmp.eq.s32.totalorder %s22, 2
      %p66 = por %p64, %p65
      %p68 = scmp.ne.s32.totalorder %s51, %s67
      %p69 = scmp.eq.s32.totalorder %s22, 0
      %p70 = por %p68, %p69
      %s71 = ssub.s32 %s25, %s34
      %s72 = ssub.s32 %s24, %s38
      %s73 = sor.u32 %s71, %s72
      %p74 = scmp.eq.s32.totalorder %s73, 0
      %s76 = sadd.s32 %s75, 1
      %s77 = scalar_select %p74, %s75, %s76
      %p80 = pneg %p74
      %p81 = scmp.eq.s32.totalorder %s16, 2
      %p82 = por %p80, %p81
      %p83 = scmp.ne.s32.totalorder %s75, %s78
      %p84 = scmp.eq.s32.totalorder %s16, 0
      %p85 = por %p83, %p84
      %p86 = scmp.ne.s32.totalorder %s75, %s78
      %p87 = scmp.eq.s32.totalorder %s21, 2
      %p88 = por %p86, %p87
      %p89 = scmp.ne.s32.totalorder %s78, %s79
      %p90 = scmp.eq.s32.totalorder %s21, 0
      %p91 = por %p89, %p90
      %p92 = scmp.ne.s32.totalorder %s78, %s79
      %p93 = scmp.eq.s32.totalorder %s22, 2
      %p94 = por %p92, %p93
      %p96 = scmp.ne.s32.totalorder %s79, %s95
      %p97 = scmp.eq.s32.totalorder %s22, 0
      %p98 = por %p96, %p97
      %s99 = ssub.s32 %s24, %s38
      %p100 = scmp.eq.s32.totalorder %s99, 0
      %s102 = sadd.s32 %s101, 1
      %s103 = scalar_select %p100, %s101, %s102
      %p106 = pneg %p100
      %p107 = scmp.eq.s32.totalorder %s16, 2
      %p108 = por %p106, %p107
      %p109 = scmp.ne.s32.totalorder %s101, %s104
      %p110 = scmp.eq.s32.totalorder %s16, 0
      %p111 = por %p109, %p110
      %p112 = scmp.ne.s32.totalorder %s101, %s104
      %p113 = scmp.eq.s32.totalorder %s21, 2
      %p114 = por %p112, %p113
      %p115 = scmp.ne.s32.totalorder %s104, %s105
      %p116 = scmp.eq.s32.totalorder %s21, 0
      %p117 = por %p115, %p116
      %p118 = scmp.ne.s32.totalorder %s104, %s105
      %p119 = scmp.eq.s32.totalorder %s22, 2
      %p120 = por %p118, %p119
      %p122 = scmp.ne.s32.totalorder %s105, %s121
      %p123 = scmp.eq.s32.totalorder %s22, 0
      %p124 = por %p122, %p123
      %s125 = ssub.s32 %s23, %s42
      %s126 = ssub.s32 %s24, %s38
      %s127 = sor.u32 %s125, %s126
      %p128 = scmp.eq.s32.totalorder %s127, 0
      %s130 = sadd.s32 %s129, 1
      %s131 = scalar_select %p128, %s129, %s130
      %p134 = pneg %p128
      %p135 = scmp.eq.s32.totalorder %s16, 2
      %p136 = por %p134, %p135
      %p137 = scmp.ne.s32.totalorder %s129, %s132
      %p138 = scmp.eq.s32.totalorder %s16, 0
      %p139 = por %p137, %p138
      %p140 = scmp.ne.s32.totalorder %s129, %s132
      %p141 = scmp.eq.s32.totalorder %s21, 2
      %p142 = por %p140, %p141
      %p143 = scmp.ne.s32.totalorder %s132, %s133
      %p144 = scmp.eq.s32.totalorder %s21, 0
      %p145 = por %p143, %p144
      %p146 = scmp.ne.s32.totalorder %s132, %s133
      %p147 = scmp.eq.s32.totalorder %s22, 2
      %p148 = por %p146, %p147
      %p150 = scmp.ne.s32.totalorder %s133, %s149
      %p151 = scmp.eq.s32.totalorder %s22, 0
      %p152 = por %p150, %p151
      %p153 = scmp.le.s32.totalorder 1, %s16
      %p154 = scmp.lt.s32.totalorder %s16, 4
      %p155 = pnand %p153, %p154
      %p156 = pneg %p155
      // Predicated region
      $region9: #{tpu_custom_call.1} parent=5 // pred_check
        _
      $region10: #{tpu_custom_call.1} parent=5 // pred_check_branch
        %158 = sbr.rel (%p155) target = $region12
      $region11: #{tpu_custom_call.1} parent=5 // pred_region
        %s159 = ssub.s32 %s16, 1
        // Predicated region
        $region13: #{tpu_custom_call.1} parent=11 // pred_check
          %p160 = pneg %p63
        $region14: #{tpu_custom_call.1} parent=11 // pred_check_branch
          %162 = sbr.rel (%p160) target = $region16
        $region15: #{tpu_custom_call.1} parent=11 // pred_region
          %s163 = smul.u32 2, %s26
          %s164 = smul.u32 2, %s28
          %s166 = ssub.s32 256, 256
          %167 = vsyncadd [#allocation4], %s166
          %s168 = smul.addr %s163, 2
          %s169 = sadd.s32 %s164, %s168
          %s170 = smul.addr %s169, 64
          %s171 = scalar_lea.hbm %s0, %s170
          %s172 = sshll.u32 [#allocation3], 4
          %s173 = int_to_ptr.vmem [resolvable:$true] %s172
          %178 = dma.hbm_to_vmem [thread:$0]  %s171, 256, %s173, [#allocation4], 128, 128, 8
        $region16: #{tpu_custom_call.1} parent=11 // pred_fallthru
          _
      $region12: #{tpu_custom_call.1} parent=5 // pred_fallthru
        _
      %p179 = scmp.lt.s32.totalorder %s16, 3
      // Predicated region
      $region17: #{tpu_custom_call.1} parent=5 // pred_check
        %p180 = pneg %p179
      $region18: #{tpu_custom_call.1} parent=5 // pred_check_branch
        %182 = sbr.rel (%p180) target = $region20
      $region19: #{tpu_custom_call.1} parent=5 // pred_region
        // Predicated region
        $region21: #{tpu_custom_call.1} parent=19 // pred_check
          %p183 = pneg %p85
        $region22: #{tpu_custom_call.1} parent=19 // pred_check_branch
          %185 = sbr.rel (%p183) target = $region24
        $region23: #{tpu_custom_call.1} parent=19 // pred_region
          %s186 = sand.u32 %s16, 1
          %s187 = scalar_lea.sflag [#allocation7], %s186
          %s188 = sand.u32 %s75, 1
          %s189 = smul.addr %s188, 256
          %s190 = scalar_lea.vmem [#allocation6], %s189
          %s191 = smul.u32 32, %s25
          %s192 = smul.u32 2, %s24
          %s194 = ssub.s32 4096, 4096
          %195 = vsyncadd %s187, %s194
          %s196 = smul.addr %s191, 6
          %s197 = sadd.s32 %s192, %s196
          %s198 = smul.addr %s197, 64
          %s199 = scalar_lea.hbm %s1, %s198
          %s200 = sshll.u32 %s190, 4
          %s201 = int_to_ptr.vmem [resolvable:$true] %s200
          %206 = dma.hbm_to_vmem [thread:$0]  %s199, 4096, %s201, %s187, 384, 128, 8
        $region24: #{tpu_custom_call.1} parent=19 // pred_fallthru
          _
        // Predicated region
        $region25: #{tpu_custom_call.1} parent=19 // pred_check
          %p207 = pneg %p111
        $region26: #{tpu_custom_call.1} parent=19 // pred_check_branch
          %209 = sbr.rel (%p207) target = $region28
        $region27: #{tpu_custom_call.1} parent=19 // pred_region
          %s210 = sand.u32 %s16, 1
          %s211 = scalar_lea.sflag [#allocation7], %s210
          %s212 = sand.u32 %s101, 1
          %s213 = smul.addr %s212, 2
          %s214 = scalar_lea.vmem [#allocation8], %s213
          %s215 = smul.u32 2, %s24
          %s217 = ssub.s32 32, 32
          %218 = vsyncadd %s211, %s217
          %s219 = smul.addr %s215, 16
          %s220 = scalar_lea.hbm %s2, %s219
          %s222 = sshll.u32 %s214, 4
          %s223 = int_to_ptr.vmem [resolvable:$true] %s222
          %225 = dma.hbm_to_vmem [thread:$0]  %s220, 32, %s223, %s211
        $region28: #{tpu_custom_call.1} parent=19 // pred_fallthru
          _
      $region20: #{tpu_custom_call.1} parent=5 // pred_fallthru
        _
      %p226 = scmp.le.s32.totalorder 1, %s16
      %p227 = scmp.lt.s32.totalorder %s16, 4
      %p228 = pnand %p226, %p227
      %p229 = pneg %p228
      // Predicated region
      $region29: #{tpu_custom_call.1} parent=5 // pred_check
        _
      $region30: #{tpu_custom_call.1} parent=5 // pred_check_branch
        %231 = sbr.rel (%p228) target = $region32
      $region31: #{tpu_custom_call.1} parent=5 // pred_region
        %s232 = ssub.s32 %s16, 1
        // Predicated region
        $region33: #{tpu_custom_call.1} parent=31 // pred_check
          %p233 = pneg %p63
        $region34: #{tpu_custom_call.1} parent=31 // pred_check_branch
          %235 = sbr.rel (%p233) target = $region36
        $region35: #{tpu_custom_call.1} parent=31 // pred_region
          %236 = dma.done [#allocation4], 256
        $region36: #{tpu_custom_call.1} parent=31 // pred_fallthru
          _
        %s237 = sand.u32 %s21, 1
        %s238 = scalar_lea.sflag [#allocation7], %s237
        %s239 = sand.u32 %s78, 1
        %s240 = smul.addr %s239, 256
        %s241 = scalar_lea.vmem [#allocation6], %s240
        // Predicated region
        $region37: #{tpu_custom_call.1} parent=31 // pred_check
          %p242 = pneg %p91
        $region38: #{tpu_custom_call.1} parent=31 // pred_check_branch
          %244 = sbr.rel (%p242) target = $region40
        $region39: #{tpu_custom_call.1} parent=31 // pred_region
          %245 = dma.done %s238, 4096
        $region40: #{tpu_custom_call.1} parent=31 // pred_fallthru
          _
        %s246 = sand.u32 %s21, 1
        %s247 = scalar_lea.sflag [#allocation7], %s246
        %s248 = sand.u32 %s104, 1
        %s249 = smul.addr %s248, 2
        %s250 = scalar_lea.vmem [#allocation8], %s249
        // Predicated region
        $region41: #{tpu_custom_call.1} parent=31 // pred_check
          %p251 = pneg %p117
        $region42: #{tpu_custom_call.1} parent=31 // pred_check_branch
          %253 = sbr.rel (%p251) target = $region44
        $region43: #{tpu_custom_call.1} parent=31 // pred_region
          %254 = dma.done %s247, 32
        $region44: #{tpu_custom_call.1} parent=31 // pred_fallthru
          _
        %p255 = pneg %p63
        %p256 = pneg %p60
        %s257 = sand.u32 %s21, 1
        %s258 = scalar_lea.sflag [#allocation7], %s257
        %s259 = sand.u32 %s78, 1
        %s260 = smul.addr %s259, 256
        %s261 = scalar_lea.vmem [#allocation6], %s260
        %p262 = pneg %p91
        %p263 = pneg %p88
        %s264 = sand.u32 %s21, 1
        %s265 = scalar_lea.sflag [#allocation7], %s264
        %s266 = sand.u32 %s104, 1
        %s267 = smul.addr %s266, 2
        %s268 = scalar_lea.vmem [#allocation8], %s267
        %p269 = pneg %p117
        %p270 = pneg %p114
        %p271 = pneg %p145
        %p272 = pneg %p142
        %s273 = sand.u32 %s132, 1
        %s274 = scalar_lea.sflag [#allocation5], %s273
        %s275 = sand.u32 %s132, 1
        %s276 = smul.addr %s275, 16
        %s277 = scalar_lea.vmem [#allocation9], %s276
        %s278 = smul.u32 2, %s26
        %s279 = smul.u32 2, %s28
        %s280 = smul.u32 32, %s28
        %s281 = smul.u32 2, %s27
        %s282 = smul.u32 2, %s27
        %s283 = smul.u32 2, %s26
        %s284 = smul.u32 2, %s27
        %p285 = scmp.eq.s32.totalorder %s28, 0
        // Predicated region
        $region45: #{tpu_custom_call.1} parent=31 // pred_check
          %p286 = pneg %p285
        $region46: #{tpu_custom_call.1} parent=31 // pred_check_branch
          %288 = sbr.rel (%p286) target = $region48
        $region47: #{tpu_custom_call.1} parent=31 // pred_region
          %289 = vst [vmem:[#allocation2] sm:$0xff] 0.0
          %290 = vst [vmem:[#allocation2 + $0x8] sm:$0xff] 0.0
          %291 = vst [vmem:[#allocation2 + $0x10] sm:$0xff] 0.0
          %292 = vst [vmem:[#allocation2 + $0x18] sm:$0xff] 0.0
        $region48: #{tpu_custom_call.1} parent=31 // pred_fallthru
          _
        %v293 = vld [vmem:[#allocation2] sm:$0xff]
        %v294 = vld [vmem:[#allocation2 + $0x8] sm:$0xff]
        %v295 = vld [vmem:[#allocation2 + $0x10] sm:$0xff]
        %v296 = vld [vmem:[#allocation2 + $0x18] sm:$0xff]
        %v297 = vld [vmem:[#allocation3] sm:$0xff]
        %v298 = vld [vmem:[#allocation3 + $0x8] sm:$0xff]
        %v299 = vld [vmem:[%s241] sm:$0xff]
        %v300 = vld [vmem:[%s241 + $0x8] sm:$0xff]
        %v301 = vld [vmem:[%s241 + $0x10] sm:$0xff]
        %v302 = vld [vmem:[%s241 + $0x18] sm:$0xff]
        %v303 = vld [vmem:[%s241 + $0x20] sm:$0xff]
        %v304 = vld [vmem:[%s241 + $0x28] sm:$0xff]
        %v305 = vld [vmem:[%s241 + $0x30] sm:$0xff]
        %v306 = vld [vmem:[%s241 + $0x38] sm:$0xff]
        %v307 = vld [vmem:[%s241 + $0x40] sm:$0xff]
        %v308 = vld [vmem:[%s241 + $0x48] sm:$0xff]
        %v309 = vld [vmem:[%s241 + $0x50] sm:$0xff]
        %v310 = vld [vmem:[%s241 + $0x58] sm:$0xff]
        %v311 = vld [vmem:[%s241 + $0x60] sm:$0xff]
        %v312 = vld [vmem:[%s241 + $0x68] sm:$0xff]
        %v313 = vld [vmem:[%s241 + $0x70] sm:$0xff]
        %v314 = vld [vmem:[%s241 + $0x78] sm:$0xff]
        %v315 = vld [vmem:[%s241 + $0x80] sm:$0xff]
        %v316 = vld [vmem:[%s241 + $0x88] sm:$0xff]
        %v317 = vld [vmem:[%s241 + $0x90] sm:$0xff]
        %v318 = vld [vmem:[%s241 + $0x98] sm:$0xff]
        %v319 = vld [vmem:[%s241 + $0xa0] sm:$0xff]
        %v320 = vld [vmem:[%s241 + $0xa8] sm:$0xff]
        %v321 = vld [vmem:[%s241 + $0xb0] sm:$0xff]
        %v322 = vld [vmem:[%s241 + $0xb8] sm:$0xff]
        %v323 = vld [vmem:[%s241 + $0xc0] sm:$0xff]
        %v324 = vld [vmem:[%s241 + $0xc8] sm:$0xff]
        %v325 = vld [vmem:[%s241 + $0xd0] sm:$0xff]
        %v326 = vld [vmem:[%s241 + $0xd8] sm:$0xff]
        %v327 = vld [vmem:[%s241 + $0xe0] sm:$0xff]
        %v328 = vld [vmem:[%s241 + $0xe8] sm:$0xff]
        %v329 = vld [vmem:[%s241 + $0xf0] sm:$0xff]
        %v330 = vld [vmem:[%s241 + $0xf8] sm:$0xff]
        %v333 = vunpack.c.l.b16 %v297
        %v334 = vunpack.c.h.b16 %v297
        %v335 = vunpack.c.l.b16 %v298
        %v336 = vunpack.c.h.b16 %v298
        %v337 = vpack.c.b16 %v335, %v333
        %v338 = vpack.c.b16 %v336, %v334
        %v373 = vunpack.c.l.b16 %v299
        %v374 = vunpack.c.h.b16 %v299
        %v375 = vunpack.c.l.b16 %v300
        %v376 = vunpack.c.h.b16 %v300
        %v377 = vunpack.c.l.b16 %v301
        %v378 = vunpack.c.h.b16 %v301
        %v379 = vunpack.c.l.b16 %v302
        %v380 = vunpack.c.h.b16 %v302
        %v381 = vunpack.c.l.b16 %v303
        %v382 = vunpack.c.h.b16 %v303
        %v383 = vunpack.c.l.b16 %v304
        %v384 = vunpack.c.h.b16 %v304
        %v385 = vunpack.c.l.b16 %v305
        %v386 = vunpack.c.h.b16 %v305
        %v387 = vunpack.c.l.b16 %v306
        %v388 = vunpack.c.h.b16 %v306
        %v389 = vunpack.c.l.b16 %v307
        %v390 = vunpack.c.h.b16 %v307
        %v391 = vunpack.c.l.b16 %v308
        %v392 = vunpack.c.h.b16 %v308
        %v393 = vunpack.c.l.b16 %v309
        %v394 = vunpack.c.h.b16 %v309
        %v395 = vunpack.c.l.b16 %v310
        %v396 = vunpack.c.h.b16 %v310
        %v397 = vunpack.c.l.b16 %v311
        %v398 = vunpack.c.h.b16 %v311
        %v399 = vunpack.c.l.b16 %v312
        %v400 = vunpack.c.h.b16 %v312
        %v401 = vunpack.c.l.b16 %v313
        %v402 = vunpack.c.h.b16 %v313
        %v403 = vunpack.c.l.b16 %v314
        %v404 = vunpack.c.h.b16 %v314
        %v405 = vunpack.c.l.b16 %v315
        %v406 = vunpack.c.h.b16 %v315
        %v407 = vunpack.c.l.b16 %v316
        %v408 = vunpack.c.h.b16 %v316
        %v409 = vunpack.c.l.b16 %v317
        %v410 = vunpack.c.h.b16 %v317
        %v411 = vunpack.c.l.b16 %v318
        %v412 = vunpack.c.h.b16 %v318
        %v413 = vunpack.c.l.b16 %v319
        %v414 = vunpack.c.h.b16 %v319
        %v415 = vunpack.c.l.b16 %v320
        %v416 = vunpack.c.h.b16 %v320
        %v417 = vunpack.c.l.b16 %v321
        %v418 = vunpack.c.h.b16 %v321
        %v419 = vunpack.c.l.b16 %v322
        %v420 = vunpack.c.h.b16 %v322
        %v421 = vunpack.c.l.b16 %v323
        %v422 = vunpack.c.h.b16 %v323
        %v423 = vunpack.c.l.b16 %v324
        %v424 = vunpack.c.h.b16 %v324
        %v425 = vunpack.c.l.b16 %v325
        %v426 = vunpack.c.h.b16 %v325
        %v427 = vunpack.c.l.b16 %v326
        %v428 = vunpack.c.h.b16 %v326
        %v429 = vunpack.c.l.b16 %v327
        %v430 = vunpack.c.h.b16 %v327
        %v431 = vunpack.c.l.b16 %v328
        %v432 = vunpack.c.h.b16 %v328
        %v433 = vunpack.c.l.b16 %v329
        %v434 = vunpack.c.h.b16 %v329
        %v435 = vunpack.c.l.b16 %v330
        %v436 = vunpack.c.h.b16 %v330
        %v437 = vpack.c.b16 %v375, %v373
        %v438 = vpack.c.b16 %v376, %v374
        %v439 = vpack.c.b16 %v379, %v377
        %v440 = vpack.c.b16 %v380, %v378
        %v441 = vpack.c.b16 %v383, %v381
        %v442 = vpack.c.b16 %v384, %v382
        %v443 = vpack.c.b16 %v387, %v385
        %v444 = vpack.c.b16 %v388, %v386
        %v445 = vpack.c.b16 %v391, %v389
        %v446 = vpack.c.b16 %v392, %v390
        %v447 = vpack.c.b16 %v395, %v393
        %v448 = vpack.c.b16 %v396, %v394
        %v449 = vpack.c.b16 %v399, %v397
        %v450 = vpack.c.b16 %v400, %v398
        %v451 = vpack.c.b16 %v403, %v401
        %v452 = vpack.c.b16 %v404, %v402
        %v453 = vpack.c.b16 %v407, %v405
        %v454 = vpack.c.b16 %v408, %v406
        %v455 = vpack.c.b16 %v411, %v409
        %v456 = vpack.c.b16 %v412, %v410
        %v457 = vpack.c.b16 %v415, %v413
        %v458 = vpack.c.b16 %v416, %v414
        %v459 = vpack.c.b16 %v419, %v417
        %v460 = vpack.c.b16 %v420, %v418
        %v461 = vpack.c.b16 %v423, %v421
        %v462 = vpack.c.b16 %v424, %v422
        %v463 = vpack.c.b16 %v427, %v425
        %v464 = vpack.c.b16 %v428, %v426
        %v465 = vpack.c.b16 %v431, %v429
        %v466 = vpack.c.b16 %v432, %v430
        %v467 = vpack.c.b16 %v435, %v433
        %v468 = vpack.c.b16 %v436, %v434
        %501 = vmatprep.subr.bf16.mxu0 %v452
        %502 = vmatpush1.bf16.msra.mxu0 %v451
        %503 = vmatprep.subr.bf16.mxu0 %v450
        %504 = vmatpush1.bf16.msra.mxu0 %v449
        %505 = vmatprep.subr.bf16.mxu0 %v448
        %506 = vmatpush1.bf16.msra.mxu0 %v447
        %507 = vmatprep.subr.bf16.mxu0 %v446
        %508 = vmatpush1.bf16.msra.mxu0 %v445
        %509 = vmatprep.subr.bf16.mxu0 %v444
        %510 = vmatpush1.bf16.msra.mxu0 %v443
        %511 = vmatprep.subr.bf16.mxu0 %v442
        %512 = vmatpush1.bf16.msra.mxu0 %v441
        %513 = vmatprep.subr.bf16.mxu0 %v440
        %514 = vmatpush1.bf16.msra.mxu0 %v439
        %515 = vmatprep.subr.bf16.mxu0 %v438
        %516 = vmatpush1.bf16.msra.mxu0 %v437
        %517 = vmatprep.subr.bf16.mxu0 %v468
        %518 = vmatpush2.bf16.msra.mxu0 %v467
        %519 = vmatprep.subr.bf16.mxu0 %v466
        %520 = vmatpush2.bf16.msra.mxu0 %v465
        %521 = vmatprep.subr.bf16.mxu0 %v464
        %522 = vmatpush2.bf16.msra.mxu0 %v463
        %523 = vmatprep.subr.bf16.mxu0 %v462
        %524 = vmatpush2.bf16.msra.mxu0 %v461
        %525 = vmatprep.subr.bf16.mxu0 %v460
        %526 = vmatpush2.bf16.msra.mxu0 %v459
        %527 = vmatprep.subr.bf16.mxu0 %v458
        %528 = vmatpush2.bf16.msra.mxu0 %v457
        %529 = vmatprep.subr.bf16.mxu0 %v456
        %530 = vmatpush2.bf16.msra.mxu0 %v455
        %531 = vmatprep.subr.bf16.mxu0 %v454
        %532 = vmatpush2.bf16.msra.mxu0 %v453
        %533 = vmatprep.mubr.bf16.mxu0 %v338
        %534 = vmatmul.mubr.bf16.gmra.mxu0 %v337
        %v535 = vpop.f32.mrf.mxu0
        %v536 = vadd.f32 0.0, %v535
        %v537 = vpop.f32.mrf.mxu0
        %v538 = vadd.f32 0.0, %v537
        %v539 = vpop.f32.mrf.mxu0
        %v540 = vadd.f32 0.0, %v539
        %v541 = vpop.f32.mrf.mxu0
        %v542 = vadd.f32 0.0, %v541
        %543 = vdwg.mxu0
        %v544 = vadd.f32 %v293, %v536
        %v545 = vadd.f32 %v294, %v538
        %v546 = vadd.f32 %v295, %v540
        %v547 = vadd.f32 %v296, %v542
        %548 = vst [vmem:[#allocation2] sm:$0xff] %v544
        %549 = vst [vmem:[#allocation2 + $0x8] sm:$0xff] %v545
        %550 = vst [vmem:[#allocation2 + $0x10] sm:$0xff] %v546
        %551 = vst [vmem:[#allocation2 + $0x18] sm:$0xff] %v547
        // Predicated region
        $region49: #{tpu_custom_call.1} parent=31 // pred_check
          %p552 = pneg %p285
        $region50: #{tpu_custom_call.1} parent=31 // pred_check_branch
          %554 = sbr.rel (%p552) target = $region52
        $region51: #{tpu_custom_call.1} parent=31 // pred_region
          %v555 = vld [vmem:[#allocation2] sm:$0xff]
          %v556 = vld [vmem:[#allocation2 + $0x8] sm:$0xff]
          %v557 = vld [vmem:[#allocation2 + $0x10] sm:$0xff]
          %v558 = vld [vmem:[#allocation2 + $0x18] sm:$0xff]
          %v559 = vld [vmem:[%s250] sm:$0x3]
          %v561 = vlaneseq
          %v562 = vshrl.u32 %v561, 7
          %v563 = vsub.s32 0, %v562
          %v564 = vrot.slane %v559, %v563
          %v565 = vlaneseq
          %v566 = vshrl.u32 %v565, 7
          %v567 = vsub.s32 1, %v566
          %v568 = vrot.slane %v559, %v567
          %v571 = vadd.f32 %v555, %v564
          %v572 = vadd.f32 %v556, %v568
          %v573 = vadd.f32 %v557, %v564
          %v574 = vadd.f32 %v558, %v568
          %v575 = vpack.c.bf16 %v573, %v571
          %v576 = vpack.c.bf16 %v574, %v572
          %v579 = vunpack.c.l.b16 %v575
          %v580 = vunpack.c.l.b16 %v576
          %v581 = vunpack.c.h.b16 %v575
          %v582 = vunpack.c.h.b16 %v576
          %v583 = vpack.c.b16 %v580, %v579
          %v584 = vpack.c.b16 %v582, %v581
          %587 = vst [vmem:[%s277] sm:$0xff] %v583
          %588 = vst [vmem:[%s277 + $0x8] sm:$0xff] %v584
        $region52: #{tpu_custom_call.1} parent=31 // pred_fallthru
          _
        %s589 = sand.u32 %s132, 1
        %s590 = scalar_lea.sflag [#allocation5], %s589
        %s591 = sand.u32 %s132, 1
        %s592 = smul.addr %s591, 16
        %s593 = scalar_lea.vmem [#allocation9], %s592
        // Predicated region
        $region53: #{tpu_custom_call.1} parent=31 // pred_check
          %p594 = pneg %p142
        $region54: #{tpu_custom_call.1} parent=31 // pred_check_branch
          %596 = sbr.rel (%p594) target = $region56
        $region55: #{tpu_custom_call.1} parent=31 // pred_region
          %s597 = smul.u32 2, %s26
          %s598 = smul.u32 2, %s27
          %s600 = ssub.s32 256, 256
          %601 = vsyncadd %s590, %s600
          %s602 = smul.addr %s597, 6
          %s603 = sadd.s32 %s598, %s602
          %s604 = smul.addr %s603, 64
          %s605 = scalar_lea.hbm %s3, %s604
          %s606 = sshll.u32 %s593, 4
          %s607 = int_to_ptr.vmem [resolvable:$true] %s606
          %612 = dma.vmem_to_hbm [thread:$0]  %s607, 256, %s605, %s590, 128, 384, 8
        $region56: #{tpu_custom_call.1} parent=31 // pred_fallthru
          _
      $region32: #{tpu_custom_call.1} parent=5 // pred_fallthru
        _
      %p613 = scmp.le.s32.totalorder 2, %s16
      // Predicated region
      $region57: #{tpu_custom_call.1} parent=5 // pred_check
        %p614 = pneg %p613
      $region58: #{tpu_custom_call.1} parent=5 // pred_check_branch
        %616 = sbr.rel (%p614) target = $region60
      $region59: #{tpu_custom_call.1} parent=5 // pred_region
        %s617 = ssub.s32 %s16, 2
        // Predicated region
        $region61: #{tpu_custom_call.1} parent=59 // pred_check
          %p618 = pneg %p148
        $region62: #{tpu_custom_call.1} parent=59 // pred_check_branch
          %620 = sbr.rel (%p618) target = $region64
        $region63: #{tpu_custom_call.1} parent=59 // pred_region
          %s621 = sand.u32 %s133, 1
          %s622 = scalar_lea.sflag [#allocation5], %s621
          %s623 = sand.u32 %s133, 1
          %s624 = smul.addr %s623, 16
          %s625 = scalar_lea.vmem [#allocation9], %s624
          %626 = dma.done %s622, 256
        $region64: #{tpu_custom_call.1} parent=59 // pred_fallthru
          _
      $region60: #{tpu_custom_call.1} parent=5 // pred_fallthru
        _
    $region6: #{tpu_custom_call.1} parent=1 // loop_footer
      %s20 = sadd.s32 1, %s16
    $region7: #{tpu_custom_call.1} parent=1 // loop_footer_branch
      %15 = sbr.rel target = $region3
    $region8: #{tpu_custom_call.1} parent=1 // loop_exit
      _
    %627 = vsyncpa [#allocation4], 1
    %s628 = scalar_lea.sflag [#allocation4], 1
    %629 = vsyncpa %s628, 1
    %630 = vsyncpa [#allocation7], 1
    %s631 = scalar_lea.sflag [#allocation7], 1
    %632 = vsyncpa %s631, 1
    %633 = vsyncpa [#allocation5], 1
    %s634 = scalar_lea.sflag [#allocation5], 1
    %635 = vsyncpa %s634, 1

</llo_original>
